<compile_context>
chip_gen: v5e
topology: v5e:2x2
jax: 0.10.0
libtpu: 0.0.40
codegen_flags: <defaults>
</compile_context>

<pallas_src>
import functools

import jax
import jax.numpy as jnp
from jax.experimental import pallas as pl
from jax.experimental.pallas import tpu as pltpu


_TARGET_TILE_ROWS = 512        # target rows per M tile
_TILE_BYTES_BUDGET = 4 << 20   # per-buffer budget for the streamed row tile
_VMEM_LIMIT_BYTES = 32 << 20   # safe on v5e/v6e (128 MiB) and v7x (64 MiB)


def _round_up(x, m):
    return (x + m - 1) // m * m


def _choose_m_tiling(m, row_bytes):
    """Pick an M tile (multiple of 8) that fits the VMEM double-buffer budget."""
    cap = max(8, (_TILE_BYTES_BUDGET // max(int(row_bytes), 1)) // 8 * 8)
    tm = max(8, min(_TARGET_TILE_ROWS, cap))
    m8 = _round_up(m, 8)
    if m8 <= tm:
        tm = m8
    mp = _round_up(m, tm)
    return tm, mp, mp // tm


# ----------------------------- Pallas kernels -------------------------------

def _matmul_bias_act_kernel(x_ref, w_ref, b_ref, o_ref, *, apply_relu):
    # x: (tm, K), w: (K, N), b: (1, N) -> o: (tm, N); f32 accumulate + epilogue.
    acc = jnp.dot(x_ref[...], w_ref[...], preferred_element_type=jnp.float32)
    acc = acc + b_ref[...]
    if apply_relu:
        acc = jnp.maximum(acc, 0.0)
    o_ref[...] = acc.astype(o_ref.dtype)


def _conv2_linear_fused_kernel(p_ref, w2_ref, b2_ref, wl_ref, bl_ref, o_ref, *, n_f2):
    # p_ref : (tm, F2, K2p)  im2col'd conv2 patches (tap-major, padded channels)
    # w2_ref: (K2p, Cp), b2_ref: (1, Cp) f32
    # wl_ref: (F2, Cp, Np)   linear weight with the torch.transpose(1,2) reorder
    #                        folded in, bl_ref: (1, Np) f32
    # o_ref : (tm, Np)
    acc = jnp.zeros(o_ref.shape, jnp.float32)
    for f in range(n_f2):                       # static, small (conv_out_size)
        h = jnp.dot(p_ref[:, f, :], w2_ref[...],
                    preferred_element_type=jnp.float32)
        h = jnp.maximum(h + b2_ref[...], 0.0)   # conv2 bias + ReLU, f32, never hits HBM
        acc = acc + jnp.dot(h.astype(wl_ref.dtype), wl_ref[f],
                            preferred_element_type=jnp.float32)
    o_ref[...] = (acc + bl_ref[...]).astype(o_ref.dtype)


# ----------------------------- Pallas wrappers ------------------------------

def matmul_bias_act(x2d, w, b2d, *, apply_relu, out_dtype):
    """(M, K) @ (K, N) + b, optional ReLU.  Gridded over M, w/b stay resident."""
    m, k = x2d.shape
    kw_, n = w.shape
    assert k == kw_ and b2d.shape == (1, n)
    out_dtype = jnp.dtype(out_dtype)
    row_bytes = k * x2d.dtype.itemsize + n * out_dtype.itemsize
    tm, mp, gm = _choose_m_tiling(m, row_bytes)
    xp = x2d if mp == m else jnp.pad(x2d, ((0, mp - m), (0, 0)))
    kern = functools.partial(_matmul_bias_act_kernel, apply_relu=apply_relu)
    out = pl.pallas_call(
        kern,
        out_shape=jax.ShapeDtypeStruct((mp, n), out_dtype),
        grid=(gm,),
        in_specs=[
            pl.BlockSpec((tm, k), lambda i: (i, 0)),
            pl.BlockSpec((k, n), lambda i: (0, 0)),    # resident across M tiles
            pl.BlockSpec((1, n), lambda i: (0, 0)),    # resident across M tiles
        ],
        out_specs=pl.BlockSpec((tm, n), lambda i: (i, 0)),
        compiler_params=pltpu.CompilerParams(
            dimension_semantics=("parallel",),
            vmem_limit_bytes=_VMEM_LIMIT_BYTES),
        cost_estimate=pl.CostEstimate(
            flops=2 * mp * k * n,
            transcendentals=0,
            bytes_accessed=(mp * k * x2d.dtype.itemsize
                            + w.size * w.dtype.itemsize
                            + mp * n * out_dtype.itemsize)),
    )(xp, w, b2d)
    return out[:m] if mp != m else out


def conv2_linear_fused(p2, w2p, b2p, wlp, blp):
    """Fused conv2 (as per-freq matmul) + bias + ReLU + reorder + linear + bias."""
    m, f2, k2p = p2.shape
    k2p_w, cp = w2p.shape
    f2_w, cp_w, np_ = wlp.shape
    assert k2p == k2p_w and f2 == f2_w and cp == cp_w
    row_bytes = f2 * k2p * p2.dtype.itemsize + np_ * 4
    tm, mp, gm = _choose_m_tiling(m, row_bytes)
    pp = p2 if mp == m else jnp.pad(p2, ((0, mp - m), (0, 0), (0, 0)))
    kern = functools.partial(_conv2_linear_fused_kernel, n_f2=f2)
    out = pl.pallas_call(
        kern,
        out_shape=jax.ShapeDtypeStruct((mp, np_), jnp.float32),
        grid=(gm,),
        in_specs=[
            pl.BlockSpec((tm, f2, k2p), lambda i: (i, 0, 0)),
            pl.BlockSpec((k2p, cp), lambda i: (0, 0)),        # resident
            pl.BlockSpec((1, cp), lambda i: (0, 0)),          # resident
            pl.BlockSpec((f2, cp, np_), lambda i: (0, 0, 0)),  # resident
            pl.BlockSpec((1, np_), lambda i: (0, 0)),         # resident
        ],
        out_specs=pl.BlockSpec((tm, np_), lambda i: (i, 0)),
        compiler_params=pltpu.CompilerParams(
            dimension_semantics=("parallel",),
            vmem_limit_bytes=_VMEM_LIMIT_BYTES),
        cost_estimate=pl.CostEstimate(
            flops=2 * mp * f2 * k2p * cp + 2 * mp * f2 * cp * np_,
            transcendentals=0,
            bytes_accessed=(mp * f2 * k2p * p2.dtype.itemsize
                            + w2p.size * w2p.dtype.itemsize
                            + wlp.size * wlp.dtype.itemsize
                            + mp * np_ * 4)),
    )(pp, w2p, b2p, wlp, blp)
    return out[:m] if mp != m else out


# ------------------------------- glue (JAX) ---------------------------------

def _out_size(in_size, kernel_size, stride):
    # torch.div(in - k + s, s, rounding_mode='floor')
    return (in_size - kernel_size + stride) // stride


def _im2col(x, k, s):
    """x: (B, H, W, C) -> (B, Ho, Wo, k*k*C); patch feature order = (kh, kw, cin)."""
    B, H, W, C = x.shape
    Ho = _out_size(H, k, s)
    Wo = _out_size(W, k, s)
    cols = []
    for i in range(k):
        for j in range(k):
            cols.append(x[:, i:i + s * (Ho - 1) + 1:s, j:j + s * (Wo - 1) + 1:s, :])
    p = jnp.stack(cols, axis=3)                 # (B, Ho, Wo, k*k, C)
    return p.reshape(B, Ho, Wo, k * k * C), Ho, Wo


def prepare_params(params, *, in_size, kernel_size1=3, stride1=2,
                   kernel_size2=3, stride2=2, compute_dtype=jnp.float32):
    """One-time (outside the hot path) weight padding / reordering."""
    w1, b1, w2, b2, wl, bl = params
    compute_dtype = jnp.dtype(compute_dtype)
    C = w1.shape[-1]
    N = wl.shape[-1]
    Cp = _round_up(C, 128)            # conv channels  -> lane-dense
    Np = _round_up(N, 128)            # linear outputs -> lane-dense
    F1 = _out_size(in_size, kernel_size1, stride1)
    F2 = _out_size(F1, kernel_size2, stride2)

    # conv1: HWIO (k1,k1,1,C) -> (k1*k1, C); pad K to x8 sublanes, C -> Cp lanes.
    K1 = kernel_size1 * kernel_size1
    K1p = _round_up(K1, 8)
    w1p = jnp.zeros((K1p, Cp), compute_dtype).at[:K1, :C].set(
        w1.reshape(K1, C).astype(compute_dtype))
    b1p = jnp.zeros((1, Cp), jnp.float32).at[0, :C].set(b1)

    # conv2: HWIO (k2,k2,C,C) -> pad channels -> (k2*k2*Cp, Cp).  y1 is produced
    # with Cp channels (pad channels are exactly zero), so K2p = k2*k2*Cp.
    w2p = (jnp.zeros((kernel_size2, kernel_size2, Cp, Cp), compute_dtype)
           .at[:, :, :C, :C].set(w2.astype(compute_dtype))
           .reshape(kernel_size2 * kernel_size2 * Cp, Cp))
    b2p = jnp.zeros((1, Cp), jnp.float32).at[0, :C].set(b2)

    # linear: torch does transpose(1,2).view -> input features ordered (c, f2)
    # c-major.  Fold that reorder into the weight: wlp[f2, c, :] = wl[c*F2+f2, :].
    wl3 = jnp.transpose(wl.reshape(C, F2, N), (1, 0, 2))       # (F2, C, N)
    wlp = jnp.zeros((F2, Cp, Np), compute_dtype).at[:, :C, :N].set(
        wl3.astype(compute_dtype))
    blp = jnp.zeros((1, Np), jnp.float32).at[0, :N].set(bl)

    return {"w1p": w1p, "b1p": b1p, "w2p": w2p, "b2p": b2p, "wlp": wlp, "blp": blp,
            "C": C, "Cp": Cp, "N": N, "Np": Np, "K1": K1, "K1p": K1p,
            "compute_dtype": compute_dtype}


def conv2d_subsampling_forward(x, x_lengths, prepared,
                               kernel_size1=3, stride1=2,
                               kernel_size2=3, stride2=2):
    """x: (B, T, F) float32, x_lengths: (B,) int32 -> ((B, T2, N), (B,) int32)."""
    cd = prepared["compute_dtype"]
    Cp, N = prepared["Cp"], prepared["N"]
    K1, K1p = prepared["K1"], prepared["K1p"]
    B, T, F = x.shape

    # ---- conv1 (1 -> C), stride s1, + ReLU : im2col -> tiled matmul kernel ----
    p1, T1, F1 = _im2col(x[..., None].astype(cd), kernel_size1, stride1)
    M1 = B * T1 * F1
    p1m = p1.reshape(M1, K1)
    if K1p != K1:
        p1m = jnp.pad(p1m, ((0, 0), (0, K1p - K1)))
    y1 = matmul_bias_act(p1m, prepared["w1p"], prepared["b1p"],
                         apply_relu=True, out_dtype=cd)          # (M1, Cp)
    y1 = y1.reshape(B, T1, F1, Cp)        # pad channels are exactly zero

    # ---- conv2 + channel/freq reorder + linear, fused in ONE kernel ----------
    # TODO(synk): build the 3x3 stride-2 windows inside the kernel (halo'd tile /
    # manual DMA) so this patch expansion never round-trips through HBM.
    p2, T2, F2 = _im2col(y1, kernel_size2, stride2)              # (B, T2, F2, 9*Cp)
    M2 = B * T2
    p2m = p2.reshape(M2, F2, kernel_size2 * kernel_size2 * Cp)
    z = conv2_linear_fused(p2m, prepared["w2p"], prepared["b2p"],
                           prepared["wlp"], prepared["blp"])     # (M2, Np) f32
    z = z[:, :N].reshape(B, T2, N)

    # ---- length subsampling (same floor-div formula as the torch module) -----
    l1 = (x_lengths - kernel_size1 + stride1) // stride1
    l2 = (l1 - kernel_size2 + stride2) // stride2
    return z, l2


# --------------------------------- main --------------------------------------

if __name__ == "__main__":
    B, T, in_size, out_size = 2, 16, 16, 8
    k1, s1, k2, s2 = 3, 2, 3, 2

    key = jax.random.PRNGKey(0)
    kx, kw1, kb1, kw2, kb2, kwl, kbl = jax.random.split(key, 7)

    x = jax.random.normal(kx, (B, T, in_size), dtype=jnp.float32)
    x_lengths = jnp.array([16, 12], dtype=jnp.int32)

    conv_out_f = _out_size(_out_size(in_size, k1, s1), k2, s2)   # freq after 2 convs
    w1 = 0.1 * jax.random.normal(kw1, (k1, k1, 1, out_size), dtype=jnp.float32)
    b1 = 0.1 * jax.random.normal(kb1, (out_size,), dtype=jnp.float32)
    w2 = 0.1 * jax.random.normal(kw2, (k2, k2, out_size, out_size), dtype=jnp.float32)
    b2 = 0.1 * jax.random.normal(kb2, (out_size,), dtype=jnp.float32)
    wl = 0.1 * jax.random.normal(kwl, (out_size * conv_out_f, out_size), dtype=jnp.float32)
    bl = 0.1 * jax.random.normal(kbl, (out_size,), dtype=jnp.float32)
    params = (w1, b1, w2, b2, wl, bl)

    # ---- f32 path: tight check against a plain-JAX reference -----------------
    prep32 = prepare_params(params, in_size=in_size, kernel_size1=k1, stride1=s1,
                            kernel_size2=k2, stride2=s2, compute_dtype=jnp.float32)
    out, out_lens = conv2d_subsampling_forward(x, x_lengths, prep32, k1, s1, k2, s2)
    out = jax.block_until_ready(out)
    out_lens = jax.block_until_ready(out_lens)

    def ref_forward(xin, prms):
        rw1, rb1, rw2, rb2, rwl, rbl = prms
        rp1, rT1, rF1 = _im2col(xin[..., None], k1, s1)
        ry1 = jnp.maximum(rp1 @ rw1.reshape(-1, out_size) + rb1, 0.0)
        rp2, rT2, rF2 = _im2col(ry1, k2, s2)
        ry2 = jnp.maximum(rp2 @ rw2.reshape(-1, out_size) + rb2, 0.0)
        ry2 = jnp.transpose(ry2, (0, 1, 3, 2)).reshape(B, rT2, -1)
        return ry2 @ rwl + rbl

    ref = ref_forward(x, params)
    expected_t2 = _out_size(_out_size(T, k1, s1), k2, s2)
    assert out.shape == (B, expected_t2, out_size)
    assert out.shape == ref.shape
    assert jnp.allclose(out, ref, atol=2e-4, rtol=2e-4)
    l1 = (x_lengths - k1 + s1) // s1
    expected_lens = (l1 - k2 + s2) // s2
    assert out_lens.shape == (B,)
    assert bool(jnp.all(out_lens == expected_lens))

    # ---- bf16 MXU-input path (v6e/v7x): f32 accumulate + f32 epilogue --------
    prep16 = prepare_params(params, in_size=in_size, kernel_size1=k1, stride1=s1,
                            kernel_size2=k2, stride2=s2, compute_dtype=jnp.bfloat16)
    out16, _ = conv2d_subsampling_forward(x, x_lengths, prep16, k1, s1, k2, s2)
    out16 = jax.block_until_ready(out16)
    assert jnp.allclose(out16.astype(jnp.float32), ref, atol=5e-2, rtol=5e-2)

    print("KERNEL_OK")
</pallas_src>

<mosaic_0001>
module attributes {stable_mosaic.version = 11 : i64} {
  func.func @_matmul_bias_act_kernel(%arg0: i32, %arg1: memref<104x16xf32, #tpu.memory_space<vmem>>, %arg2: memref<16x128xf32, #tpu.memory_space<vmem>>, %arg3: memref<1x128xf32, #tpu.memory_space<vmem>>, %arg4: memref<104x128xf32, #tpu.memory_space<vmem>>) attributes {dimension_semantics = [#tpu.dimension_semantics<parallel>], iteration_bounds = array<i64: 1>, scalar_prefetch = 0 : i64, scratch_operands = 0 : i64, tpu.core_type = #tpu.core_type<tc>, window_params = [{transform_indices = @transform_0, window_bounds = array<i64: 104, 16>}, {pipeline_mode = #tpu.pipeline_mode<synchronous>, transform_indices = @transform_1, window_bounds = array<i64: 16, 128>}, {pipeline_mode = #tpu.pipeline_mode<synchronous>, transform_indices = @transform_2, window_bounds = array<i64: 1, 128>}, {transform_indices = @transform_3, window_bounds = array<i64: 104, 128>}]} {
    %c0 = arith.constant 0 : index
    %c0_0 = arith.constant 0 : index
    %0 = vector.load %arg1[%c0, %c0_0] : memref<104x16xf32, #tpu.memory_space<vmem>>, vector<104x16xf32>
    %c0_1 = arith.constant 0 : index
    %c0_2 = arith.constant 0 : index
    %1 = vector.load %arg2[%c0_1, %c0_2] : memref<16x128xf32, #tpu.memory_space<vmem>>, vector<16x128xf32>
    %cst = arith.constant dense<0.000000e+00> : vector<104x128xf32>
    %2 = tpu.matmul %0, %1, %cst {dimension_numbers = #tpu.dot_dimension_numbers<[1], [0], [0], [1], [0, 0, 1, 1], [], []>} : vector<104x16xf32>, vector<16x128xf32>, vector<104x128xf32> -> vector<104x128xf32>
    %c0_3 = arith.constant 0 : index
    %c0_4 = arith.constant 0 : index
    %3 = vector.load %arg3[%c0_3, %c0_4] : memref<1x128xf32, #tpu.memory_space<vmem>>, vector<1x128xf32>
    %4 = vector.broadcast %3 : vector<1x128xf32> to vector<104x128xf32>
    %5 = arith.addf %2, %4 : vector<104x128xf32>
    %cst_5 = arith.constant 0.000000e+00 : f32
    %6 = vector.broadcast %cst_5 : f32 to vector<104x128xf32>
    %7 = arith.maximumf %5, %6 : vector<104x128xf32>
    %c0_6 = arith.constant 0 : index
    %c0_7 = arith.constant 0 : index
    %8 = vector.load %arg4[%c0_6, %c0_7] : memref<104x128xf32, #tpu.memory_space<vmem>>, vector<104x128xf32>
    tpu.vector_store %arg4[%c0_6, %c0_7], %7 {strides = array<i32>} : memref<104x128xf32, #tpu.memory_space<vmem>>, vector<104x128xf32>,
    return
  }
  func.func @transform_0(%arg0: i32) -> (i32, i32) {
    %c0_i32 = arith.constant 0 : i32
    %c0_i32_0 = arith.constant 0 : i32
    return %arg0, %c0_i32 : i32, i32
  }
  func.func @transform_1(%arg0: i32) -> (i32, i32) {
    %c0_i32 = arith.constant 0 : i32
    %c0_i32_0 = arith.constant 0 : i32
    %c0_i32_1 = arith.constant 0 : i32
    return %c0_i32, %c0_i32_0 : i32, i32
  }
  func.func @transform_2(%arg0: i32) -> (i32, i32) {
    %c0_i32 = arith.constant 0 : i32
    %c0_i32_0 = arith.constant 0 : i32
    %c0_i32_1 = arith.constant 0 : i32
    return %c0_i32, %c0_i32_0 : i32, i32
  }
  func.func @transform_3(%arg0: i32) -> (i32, i32) {
    %c0_i32 = arith.constant 0 : i32
    %c0_i32_0 = arith.constant 0 : i32
    return %arg0, %c0_i32 : i32, i32
  }
}

</mosaic_0001>

<llo_original>
// kernel: tpu_custom_call.1
$region0: #{tpu_custom_call.1}
  #allocation0 [shape = 'u32[]', space=smem, size = 0x4, offset = 0x4, fixed_abs, tag = 'smem constant byte address 0x4 - core index']
  #allocation1 [shape = 'u32[72,128]{1,0:T(1,128)}', space=vmem, size = 0x9000, scoped, tag = 'internal scratch']
  %s0 = inlined_call_operand.vmem [shape: f32[104,16], index: 0, kind: input, shape index: {}]
  %s1 = inlined_call_operand.vmem [shape: f32[16,128], index: 1, kind: input, shape index: {}]
  %s2 = inlined_call_operand.vmem [shape: f32[1,128], index: 2, kind: input, shape index: {}]
  %s3 = inlined_call_operand.hbm [shape: f32[104,128], index: 3, kind: output, shape index: {}]
  %s4 = sld [smem:[#allocation0]]
  $region22: #{tpu_custom_call.1} parent=0
    _
  %s6 = ssub.s32 1, %s4
  %s7 = scalar_select 0, %s6, %s4
  $region1: #{tpu_custom_call.1} parent=0
    #allocation2 [shape = 'u8[53248]{0}', space=vmem, size = 0xd000, scoped, tag = 'output window, operand 0, single buffered']
    #allocation3 [shape = 's32[1]{0}', space=sflag, size = 0x4, scoped, tag = 'scoped memory for tpu_custom_call.1']
    %8 = vsyncpa [#allocation3], 0
    // Predicated region
    $region2: #{tpu_custom_call.1} parent=1 // pred_check
      _
    $region3: #{tpu_custom_call.1} parent=1 // pred_check_branch
      %10 = sbr.rel (0) target = $region5
    $region4: #{tpu_custom_call.1} parent=1 // pred_region
      _
    $region5: #{tpu_custom_call.1} parent=1 // pred_fallthru
      _
    // Predicated region
    $region6: #{tpu_custom_call.1} parent=1 // pred_check
      _
    $region7: #{tpu_custom_call.1} parent=1 // pred_check_branch
      %12 = sbr.rel (0) target = $region9
    $region8: #{tpu_custom_call.1} parent=1 // pred_region
      _
    $region9: #{tpu_custom_call.1} parent=1 // pred_fallthru
      _
    // Predicated region
    $region10: #{tpu_custom_call.1} parent=1 // pred_check
      _
    $region11: #{tpu_custom_call.1} parent=1 // pred_check_branch
      %14 = sbr.rel (0) target = $region13
    $region12: #{tpu_custom_call.1} parent=1 // pred_region
      _
    $region13: #{tpu_custom_call.1} parent=1 // pred_fallthru
      _
    %v15 = vld [vmem:[%s0] sm:$0xff]
    %v16 = vld [vmem:[%s0 + $0x8] sm:$0xff]
    %v17 = vld [vmem:[%s0 + $0x10] sm:$0xff]
    %v18 = vld [vmem:[%s0 + $0x18] sm:$0xff]
    %v19 = vld [vmem:[%s0 + $0x20] sm:$0xff]
    %v20 = vld [vmem:[%s0 + $0x28] sm:$0xff]
    %v21 = vld [vmem:[%s0 + $0x30] sm:$0xff]
    %v22 = vld [vmem:[%s0 + $0x38] sm:$0xff]
    %v23 = vld [vmem:[%s0 + $0x40] sm:$0xff]
    %v24 = vld [vmem:[%s0 + $0x48] sm:$0xff]
    %v25 = vld [vmem:[%s0 + $0x50] sm:$0xff]
    %v26 = vld [vmem:[%s0 + $0x58] sm:$0xff]
    %v27 = vld [vmem:[%s0 + $0x60] sm:$0xff]
    %v28 = vld [vmem:[%s1] sm:$0xff]
    %v29 = vld [vmem:[%s1 + $0x8] sm:$0xff]
    %v30 = vld [vmem:[%s2] sm:$0x1]
    %v32 = vperm.slane %v30, 0
    %vm34 = vcmask 130048
    %v36 = vsel %vm34, %v15, 0
    %v39 = vsel %vm34, %v16, 0
    %v42 = vsel %vm34, %v17, 0
    %v45 = vsel %vm34, %v18, 0
    %v48 = vsel %vm34, %v19, 0
    %v51 = vsel %vm34, %v20, 0
    %v54 = vsel %vm34, %v21, 0
    %v57 = vsel %vm34, %v22, 0
    %v60 = vsel %vm34, %v23, 0
    %v63 = vsel %vm34, %v24, 0
    %v66 = vsel %vm34, %v25, 0
    %v69 = vsel %vm34, %v26, 0
    %v72 = vsel %vm34, %v27, 0
    %74 = vmatpush.msra.mxu0 0.0
    %75 = vmatpush.msra.mxu0 0.0
    %76 = vmatpush.msra.mxu0 0.0
    %77 = vmatpush.msra.mxu0 0.0
    %78 = vmatpush.msra.mxu0 0.0
    %79 = vmatpush.msra.mxu0 0.0
    %80 = vmatpush.msra.mxu0 0.0
    %81 = vmatpush.msra.mxu0 0.0
    %82 = vmatpush.msra.mxu0 0.0
    %83 = vmatpush.msra.mxu0 0.0
    %84 = vmatpush.msra.mxu0 0.0
    %85 = vmatpush.msra.mxu0 0.0
    %86 = vmatpush.msra.mxu0 0.0
    %87 = vmatpush.msra.mxu0 0.0
    %88 = vmatpush.msra.mxu0 %v29
    %89 = vmatpush.msra.mxu0 %v28
    %90 = vmatmul.f32.gmra.mxu0 %v36
    %v91 = vpop.f32.mrf.mxu0
    %v92 = vadd.f32 %v32, %v91
    %93 = vmatmul.f32.gmra.mxu0 %v39
    %v94 = vpop.f32.mrf.mxu0
    %v95 = vadd.f32 %v32, %v94
    %96 = vmatmul.f32.gmra.mxu0 %v42
    %v97 = vpop.f32.mrf.mxu0
    %v98 = vadd.f32 %v32, %v97
    %99 = vmatmul.f32.gmra.mxu0 %v45
    %v100 = vpop.f32.mrf.mxu0
    %v101 = vadd.f32 %v32, %v100
    %102 = vmatmul.f32.gmra.mxu0 %v48
    %v103 = vpop.f32.mrf.mxu0
    %v104 = vadd.f32 %v32, %v103
    %105 = vmatmul.f32.gmra.mxu0 %v51
    %v106 = vpop.f32.mrf.mxu0
    %v107 = vadd.f32 %v32, %v106
    %108 = vmatmul.f32.gmra.mxu0 %v54
    %v109 = vpop.f32.mrf.mxu0
    %v110 = vadd.f32 %v32, %v109
    %111 = vmatmul.f32.gmra.mxu0 %v57
    %v112 = vpop.f32.mrf.mxu0
    %v113 = vadd.f32 %v32, %v112
    %114 = vmatmul.f32.gmra.mxu0 %v60
    %v115 = vpop.f32.mrf.mxu0
    %v116 = vadd.f32 %v32, %v115
    %117 = vmatmul.f32.gmra.mxu0 %v63
    %v118 = vpop.f32.mrf.mxu0
    %v119 = vadd.f32 %v32, %v118
    %120 = vmatmul.f32.gmra.mxu0 %v66
    %v121 = vpop.f32.mrf.mxu0
    %v122 = vadd.f32 %v32, %v121
    %123 = vmatmul.f32.gmra.mxu0 %v69
    %v124 = vpop.f32.mrf.mxu0
    %v125 = vadd.f32 %v32, %v124
    %126 = vmatmul.f32.gmra.mxu0 %v72
    %v127 = vpop.f32.mrf.mxu0
    %v128 = vadd.f32 %v32, %v127
    %129 = vdwg.mxu0
    %v130 = vmax.f32 %v92, 0.0
    %v131 = vmax.f32 %v95, 0.0
    %v132 = vmax.f32 %v98, 0.0
    %v133 = vmax.f32 %v101, 0.0
    %v134 = vmax.f32 %v104, 0.0
    %v135 = vmax.f32 %v107, 0.0
    %v136 = vmax.f32 %v110, 0.0
    %v137 = vmax.f32 %v113, 0.0
    %v138 = vmax.f32 %v116, 0.0
    %v139 = vmax.f32 %v119, 0.0
    %v140 = vmax.f32 %v122, 0.0
    %v141 = vmax.f32 %v125, 0.0
    %v142 = vmax.f32 %v128, 0.0
    %143 = vst [vmem:[#allocation2] sm:$0xff] %v130
    %144 = vst [vmem:[#allocation2 + $0x8] sm:$0xff] %v131
    %145 = vst [vmem:[#allocation2 + $0x10] sm:$0xff] %v132
    %146 = vst [vmem:[#allocation2 + $0x18] sm:$0xff] %v133
    %147 = vst [vmem:[#allocation2 + $0x20] sm:$0xff] %v134
    %148 = vst [vmem:[#allocation2 + $0x28] sm:$0xff] %v135
    %149 = vst [vmem:[#allocation2 + $0x30] sm:$0xff] %v136
    %150 = vst [vmem:[#allocation2 + $0x38] sm:$0xff] %v137
    %151 = vst [vmem:[#allocation2 + $0x40] sm:$0xff] %v138
    %152 = vst [vmem:[#allocation2 + $0x48] sm:$0xff] %v139
    %153 = vst [vmem:[#allocation2 + $0x50] sm:$0xff] %v140
    %154 = vst [vmem:[#allocation2 + $0x58] sm:$0xff] %v141
    %155 = vst [vmem:[#allocation2 + $0x60] sm:$0xff] %v142
    // Predicated region
    $region14: #{tpu_custom_call.1} parent=1 // pred_check
      _
    $region15: #{tpu_custom_call.1} parent=1 // pred_check_branch
      %157 = sbr.rel (0) target = $region17
    $region16: #{tpu_custom_call.1} parent=1 // pred_region
      %159 = vsyncadd [#allocation3], 0
      %s160 = sshll.u32 [#allocation2], 4
      %s161 = int_to_ptr.vmem [resolvable:$true] %s160
      %s162 = sshll.u32 %s3, 4
      %s163 = int_to_ptr.hbm [resolvable:$true] %s162
      %168 = dma.vmem_to_hbm [thread:$0]  %s161, 1664, %s163, [#allocation3], 128, 128, 8
    $region17: #{tpu_custom_call.1} parent=1 // pred_fallthru
      _
    // Predicated region
    $region18: #{tpu_custom_call.1} parent=1 // pred_check
      _
    $region19: #{tpu_custom_call.1} parent=1 // pred_check_branch
      %170 = sbr.rel (0) target = $region21
    $region20: #{tpu_custom_call.1} parent=1 // pred_region
      %172 = dma.done [#allocation3], 1664
    $region21: #{tpu_custom_call.1} parent=1 // pred_fallthru
      _
    %173 = vsyncpa [#allocation3], 1

</llo_original>
